<compile_context>
chip_gen: v7x
topology: tpu7x:2x2x1
jax: 0.10.0
libtpu: 0.0.40
codegen_flags: <defaults>
</compile_context>

<pallas_src>
import jax
import jax.numpy as jnp
from jax import lax
from jax.experimental import pallas as pl
from jax.experimental.pallas import tpu as pltpu


_LANE = 128
_SUBLANE = 8


def _round_up(x, m):
    return ((x + m - 1) // m) * m


def _cdiv(a, b):
    return -(-a // b)


def _vmem_capacity_bytes():
    """Physical VMEM of the current TPU generation (conservative fallback)."""
    try:
        info = pltpu.get_tpu_info()
        cap = getattr(info, "vmem_capacity_bytes", None)
        if cap:
            return int(cap)
    except Exception:
        pass
    return 64 * 1024 * 1024  # v7x-safe fallback


def _logreg_kernel(x_ref, w_ref, b_ref, o_ref, acc_ref):
    # x_ref: (TB, TK)  w_ref: (TK, C_pad)  b_ref: (1, C_pad)
    # o_ref: (TB, C_pad)  acc_ref: (TB, C_pad) f32 scratch
    k = pl.program_id(1)

    @pl.when(k == 0)
    def _init():
        acc_ref[...] = jnp.zeros_like(acc_ref)

    # Canonical (M,K)@(K,N) MXU matmul, f32 accumulation.
    acc_ref[...] += jnp.dot(x_ref[...], w_ref[...],
                            preferred_element_type=jnp.float32)

    @pl.when(k == pl.num_programs(1) - 1)
    def _finish():
        logits = acc_ref[...] + b_ref[...]
        # Numerically stable softmax along the lane-dense padded class axis.
        m = jnp.max(logits, axis=-1, keepdims=True)
        e = jnp.exp(logits - m)
        denom = jnp.sum(e, axis=-1, keepdims=True)
        o_ref[...] = (e / denom).astype(o_ref.dtype)  # exact divide (cheap, (TB,1))


def logistic_regression_forward(x, weight, bias):
    """softmax(x @ weight.T + bias, axis=1).

    x: (B, F) f32, weight: (C, F) f32 (PyTorch nn.Linear layout), bias: (C,) f32.
    Returns (B, C) f32.
    """
    B, F = x.shape
    C = weight.shape[0]
    itemsize = 4  # f32

    # ---- Class axis: pad to a lane-dense multiple of 128 --------------------
    C_pad = _round_up(C, _LANE)
    # Pre-transpose once in the wrapper: canonical MXU (K, N) orientation.
    w_t = weight.T  # (F, C)
    if C_pad != C:
        w_t = jnp.pad(w_t, ((0, 0), (0, C_pad - C)))
        # Padded classes get a large finite negative bias so exp() underflows
        # to exactly 0.  Safe as long as real logits are finite (true here).
        bias = jnp.pad(bias, (0, C_pad - C), constant_values=-1e30)
    b2 = bias.reshape(1, C_pad)

    # ---- Generation-aware VMEM budget / tile caps ---------------------------
    vmem_cap = _vmem_capacity_bytes()
    if vmem_cap >= 128 * 1024 * 1024:        # v5e / v6e (128 MiB)
        budget = 80 * 1024 * 1024
        vmem_limit = 100 * 1024 * 1024
        tb_cap = 1024
    else:                                    # v7x (64 MiB physical, 32 scoped)
        budget = 24 * 1024 * 1024
        vmem_limit = 32 * 1024 * 1024
        tb_cap = 512

    def vmem_bytes(tb, tk):
        # Honest accounting: inputs/outputs are double-buffered by default,
        # plus the f32 accumulator scratch and ~3 tiles of epilogue temporaries
        # (logits / exp / probs).
        return (2 * tb * tk          # x (double-buffered)
                + 2 * tk * C_pad     # weight (double-buffered)
                + 2 * C_pad          # bias
                + 2 * tb * C_pad     # output (double-buffered)
                + tb * C_pad         # accumulator scratch
                + 3 * tb * C_pad     # kernel temporaries
                ) * itemsize

    # ---- Tile selection ------------------------------------------------------
    B_pad0 = _round_up(B, _SUBLANE)

    # Preferred path: full feature dim as a single K slab (weight resident).
    tk = F
    F_pad = F
    tb = min(tb_cap, B_pad0)
    while tb > _SUBLANE and vmem_bytes(tb, tk) > budget:
        tb -= _SUBLANE

    if vmem_bytes(tb, tk) > budget:
        # Weight slab alone does not fit: K-tile the feature axis (tk must be a
        # multiple of 128 so x's lane dim stays legal).
        tk = _LANE
        while 2 * tk < F and vmem_bytes(_SUBLANE, 2 * tk) <= budget:
            tk *= 2
        F_pad = _round_up(F, tk)
        tb = min(tb_cap, B_pad0)
        while tb > _SUBLANE and vmem_bytes(tb, tk) > budget:
            tb -= _SUBLANE

    # Distribute batch rows evenly over steps (over-pad <= 8 rows/step instead
    # of padding B up to a multiple of TB).
    n_b = _cdiv(B_pad0, tb)
    if n_b == 1 and B_pad0 >= 2 * _SUBLANE:
        # Give v7x's second TensorCore work; neutral (one extra cheap step)
        # on single-TC v5e/v6e.
        n_b = 2
    tb = _round_up(_cdiv(B_pad0, n_b), _SUBLANE)
    B_pad = n_b * tb
    n_k = max(F_pad // tk, 1)

    # ---- Pad operands --------------------------------------------------------
    if B_pad != B or F_pad != F:
        x = jnp.pad(x, ((0, B_pad - B), (0, F_pad - F)))
    if F_pad != F:
        w_t = jnp.pad(w_t, ((0, F_pad - F), (0, 0)))  # zero rows: no contribution

    grid = (n_b, n_k)

    out = pl.pallas_call(
        _logreg_kernel,
        out_shape=jax.ShapeDtypeStruct((B_pad, C_pad), jnp.float32),
        grid_spec=pltpu.PrefetchScalarGridSpec(
            num_scalar_prefetch=0,
            grid=grid,
            in_specs=[
                pl.BlockSpec((tb, tk), lambda i, k: (i, k)),       # x streams
                pl.BlockSpec((tk, C_pad), lambda i, k: (k, 0)),    # weight (K,N)
                pl.BlockSpec((1, C_pad), lambda i, k: (0, 0)),     # bias resident
            ],
            out_specs=pl.BlockSpec((tb, C_pad), lambda i, k: (i, 0)),
            scratch_shapes=[pltpu.VMEM((tb, C_pad), jnp.float32)],
        ),
        compiler_params=pltpu.CompilerParams(
            dimension_semantics=("parallel", "arbitrary"),  # batch || / K reduce
            vmem_limit_bytes=vmem_limit,
        ),
    )(x, w_t, b2)

    return out[:B, :C]


if __name__ == "__main__":
    # Small shapes consistent with the module: batch=8, input_size=32, classes=16
    B, F, C = 8, 32, 16

    key = jax.random.PRNGKey(0)
    kx, kw, kb = jax.random.split(key, 3)

    x = jax.random.normal(kx, (B, F), dtype=jnp.float32)
    # Deterministic "nn.Linear"-style init (uniform in +-1/sqrt(F))
    bound = 1.0 / (F ** 0.5)
    weight = jax.random.uniform(kw, (C, F), minval=-bound, maxval=bound,
                                dtype=jnp.float32)
    bias = jax.random.uniform(kb, (C,), minval=-bound, maxval=bound,
                              dtype=jnp.float32)

    out = jax.block_until_ready(logistic_regression_forward(x, weight, bias))

    # Reference: softmax(x @ W.T + b) in plain JAX (highest-precision matmul).
    ref = jax.nn.softmax(
        jnp.dot(x, weight.T, precision=lax.Precision.HIGHEST) + bias, axis=1)

    assert out.shape == (B, C)
    assert bool(jnp.allclose(jnp.sum(out, axis=1), 1.0, atol=1e-5))
    assert bool(jnp.allclose(out, ref, atol=1e-3))

    print("KERNEL_OK")
</pallas_src>

<mosaic_0001>
module attributes {stable_mosaic.version = 11 : i64} {
  func.func @_logreg_kernel(%arg0: i32, %arg1: i32, %arg2: memref<8x32xf32, #tpu.memory_space<vmem>>, %arg3: memref<32x128xf32, #tpu.memory_space<vmem>>, %arg4: memref<1x128xf32, #tpu.memory_space<vmem>>, %arg5: memref<8x128xf32, #tpu.memory_space<vmem>>, %arg6: memref<8x128xf32, #tpu.memory_space<vmem>>) attributes {dimension_semantics = [#tpu.dimension_semantics<parallel>, #tpu.dimension_semantics<arbitrary>], iteration_bounds = array<i64: 1, 1>, scalar_prefetch = 0 : i64, scratch_operands = 1 : i64, tpu.core_type = #tpu.core_type<tc>, window_params = [{transform_indices = @transform_0, window_bounds = array<i64: 8, 32>}, {transform_indices = @transform_1, window_bounds = array<i64: 32, 128>}, {pipeline_mode = #tpu.pipeline_mode<synchronous>, transform_indices = @transform_2, window_bounds = array<i64: 1, 128>}, {transform_indices = @transform_3, window_bounds = array<i64: 8, 128>}]} {
    %c0_i32 = arith.constant 0 : i32
    %0 = arith.cmpi eq, %arg1, %c0_i32 : i32
    %1 = arith.extui %0 : i1 to i32
    %c0_i32_0 = arith.constant 0 : i32
    %2 = arith.cmpi ne, %1, %c0_i32_0 : i32
    scf.if %2 {
      %cst_10 = arith.constant 0.000000e+00 : f32
      %12 = vector.broadcast %cst_10 : f32 to vector<8x128xf32>
      %c0_11 = arith.constant 0 : index
      %c0_12 = arith.constant 0 : index
      %13 = vector.load %arg6[%c0_11, %c0_12] : memref<8x128xf32, #tpu.memory_space<vmem>>, vector<8x128xf32>
      tpu.vector_store %arg6[%c0_11, %c0_12], %12 {strides = array<i32>} : memref<8x128xf32, #tpu.memory_space<vmem>>, vector<8x128xf32>,
    } else {
    }
    %c0 = arith.constant 0 : index
    %c0_1 = arith.constant 0 : index
    %3 = vector.load %arg6[%c0, %c0_1] : memref<8x128xf32, #tpu.memory_space<vmem>>, vector<8x128xf32>
    %c0_2 = arith.constant 0 : index
    %c0_3 = arith.constant 0 : index
    %4 = vector.load %arg2[%c0_2, %c0_3] : memref<8x32xf32, #tpu.memory_space<vmem>>, vector<8x32xf32>
    %c0_4 = arith.constant 0 : index
    %c0_5 = arith.constant 0 : index
    %5 = vector.load %arg3[%c0_4, %c0_5] : memref<32x128xf32, #tpu.memory_space<vmem>>, vector<32x128xf32>
    %cst = arith.constant dense<0.000000e+00> : vector<8x128xf32>
    %6 = tpu.matmul %4, %5, %cst {dimension_numbers = #tpu.dot_dimension_numbers<[1], [0], [0], [1], [0, 0, 1, 1], [], []>} : vector<8x32xf32>, vector<32x128xf32>, vector<8x128xf32> -> vector<8x128xf32>
    %7 = arith.addf %3, %6 : vector<8x128xf32>
    %c0_6 = arith.constant 0 : index
    %c0_7 = arith.constant 0 : index
    %8 = vector.load %arg6[%c0_6, %c0_7] : memref<8x128xf32, #tpu.memory_space<vmem>>, vector<8x128xf32>
    tpu.vector_store %arg6[%c0_6, %c0_7], %7 {strides = array<i32>} : memref<8x128xf32, #tpu.memory_space<vmem>>, vector<8x128xf32>,
    %c0_i32_8 = arith.constant 0 : i32
    %9 = arith.cmpi eq, %arg1, %c0_i32_8 : i32
    %10 = arith.extui %9 : i1 to i32
    %c0_i32_9 = arith.constant 0 : i32
    %11 = arith.cmpi ne, %10, %c0_i32_9 : i32
    scf.if %11 {
      %c0_10 = arith.constant 0 : index
      %c0_11 = arith.constant 0 : index
      %12 = vector.load %arg6[%c0_10, %c0_11] : memref<8x128xf32, #tpu.memory_space<vmem>>, vector<8x128xf32>
      %c0_12 = arith.constant 0 : index
      %c0_13 = arith.constant 0 : index
      %13 = vector.load %arg4[%c0_12, %c0_13] : memref<1x128xf32, #tpu.memory_space<vmem>>, vector<1x128xf32>
      %14 = vector.broadcast %13 : vector<1x128xf32> to vector<8x128xf32>
      %15 = arith.addf %12, %14 : vector<8x128xf32>
      %cst_14 = arith.constant dense<0xFF800000> : vector<8xf32>
      %16 = vector.multi_reduction <maximumf>, %15, %cst_14 [1] : vector<8x128xf32> to vector<8xf32>
      %17 = vector.shape_cast %16 : vector<8xf32> to vector<8x1xf32>
      %18 = vector.broadcast %17 : vector<8x1xf32> to vector<8x128xf32>
      %19 = arith.subf %15, %18 : vector<8x128xf32>
      %20 = math.exp %19 : vector<8x128xf32>
      %cst_15 = arith.constant dense<0.000000e+00> : vector<8xf32>
      %21 = vector.multi_reduction <add>, %20, %cst_15 [1] : vector<8x128xf32> to vector<8xf32>
      %22 = vector.shape_cast %21 : vector<8xf32> to vector<8x1xf32>
      %23 = vector.broadcast %22 : vector<8x1xf32> to vector<8x128xf32>
      %24 = arith.divf %20, %23 : vector<8x128xf32>
      %c0_16 = arith.constant 0 : index
      %c0_17 = arith.constant 0 : index
      %25 = vector.load %arg5[%c0_16, %c0_17] : memref<8x128xf32, #tpu.memory_space<vmem>>, vector<8x128xf32>
      tpu.vector_store %arg5[%c0_16, %c0_17], %24 {strides = array<i32>} : memref<8x128xf32, #tpu.memory_space<vmem>>, vector<8x128xf32>,
    } else {
    }
    return
  }
  func.func @transform_0(%arg0: i32, %arg1: i32) -> (i32, i32) {
    %c0_i32 = arith.constant 0 : i32
    return %arg0, %arg1 : i32, i32
  }
  func.func @transform_1(%arg0: i32, %arg1: i32) -> (i32, i32) {
    %c0_i32 = arith.constant 0 : i32
    %c0_i32_0 = arith.constant 0 : i32
    return %arg1, %c0_i32 : i32, i32
  }
  func.func @transform_2(%arg0: i32, %arg1: i32) -> (i32, i32) {
    %c0_i32 = arith.constant 0 : i32
    %c0_i32_0 = arith.constant 0 : i32
    %c0_i32_1 = arith.constant 0 : i32
    return %c0_i32, %c0_i32_0 : i32, i32
  }
  func.func @transform_3(%arg0: i32, %arg1: i32) -> (i32, i32) {
    %c0_i32 = arith.constant 0 : i32
    %c0_i32_0 = arith.constant 0 : i32
    return %arg0, %c0_i32 : i32, i32
  }
}

</mosaic_0001>

<llo_original>
// kernel: tpu_custom_call.1
$region0: #{tpu_custom_call.1}
  #allocation0 [shape = 'u32[]', space=smem, size = 0x4, offset = 0x4, fixed_abs, tag = 'smem constant byte address 0x4 - core index']
  #allocation1 [shape = 'u32[144,128]{1,0:T(1,128)}', space=vmem, size = 0x12000, scoped, tag = 'internal scratch']
  #allocation2 [shape = 'f32[8,128]{1,0:T(8,128)}', space=vmem, size = 0x1000, scoped, tag = 'scratch operand']
  %s0 = inlined_call_operand.hbm [shape: f32[8,32], index: 0, kind: input, shape index: {}]
  %s1 = inlined_call_operand.hbm [shape: f32[32,128], index: 1, kind: input, shape index: {}]
  %s2 = inlined_call_operand.vmem [shape: f32[1,128], index: 2, kind: input, shape index: {}]
  %s3 = inlined_call_operand.hbm [shape: f32[8,128], index: 3, kind: output, shape index: {}]
  %s4 = sld [smem:[#allocation0]]
  $region38: #{tpu_custom_call.1} parent=0
    _
  %s6 = ssub.s32 1, %s4
  %s7 = scalar_select 0, %s6, %s4
  $region1: #{tpu_custom_call.1} parent=0
    #allocation3 [shape = 'u8[4096]{0}', space=vmem, size = 0x1000, scoped, tag = 'input window, operand 0, single buffered']
    #allocation4 [shape = 's32[1]{0}', space=sflag, size = 0x4, scoped, tag = 'scoped memory for tpu_custom_call.1']
    #allocation5 [shape = 's32[1]{0}', space=sflag, size = 0x4, scoped, tag = 'scoped memory for tpu_custom_call.1']
    #allocation6 [shape = 'u8[16384]{0}', space=vmem, size = 0x4000, scoped, tag = 'input window, operand 1, single buffered']
    #allocation7 [shape = 's32[1]{0}', space=sflag, size = 0x4, scoped, tag = 'scoped memory for tpu_custom_call.1']
    #allocation8 [shape = 'u8[4096]{0}', space=vmem, size = 0x1000, scoped, tag = 'output window, operand 0, single buffered']
    %8 = vsyncpa [#allocation4], 0
    %9 = vsyncpa [#allocation7], 0
    %10 = vsyncpa [#allocation5], 0
    // Predicated region
    $region2: #{tpu_custom_call.1} parent=1 // pred_check
      _
    $region3: #{tpu_custom_call.1} parent=1 // pred_check_branch
      %12 = sbr.rel (0) target = $region5
    $region4: #{tpu_custom_call.1} parent=1 // pred_region
      %s14 = ssub.s32 128, 128
      %15 = vsyncadd [#allocation4], %s14
      %s17 = sshll.u32 [#allocation3], 4
      %s18 = int_to_ptr.vmem [resolvable:$true] %s17
      %20 = dma.hbm_to_vmem [thread:$0]  %s0, 128, %s18, [#allocation4]
    $region5: #{tpu_custom_call.1} parent=1 // pred_fallthru
      _
    // Predicated region
    $region6: #{tpu_custom_call.1} parent=1 // pred_check
      _
    $region7: #{tpu_custom_call.1} parent=1 // pred_check_branch
      %22 = sbr.rel (0) target = $region9
    $region8: #{tpu_custom_call.1} parent=1 // pred_region
      %s24 = ssub.s32 512, 512
      %25 = vsyncadd [#allocation7], %s24
      %s26 = sshll.u32 [#allocation6], 4
      %s27 = int_to_ptr.vmem [resolvable:$true] %s26
      %32 = dma.hbm_to_vmem [thread:$0]  %s1, 512, %s27, [#allocation7], 128, 128, 8
    $region9: #{tpu_custom_call.1} parent=1 // pred_fallthru
      _
    // Predicated region
    $region10: #{tpu_custom_call.1} parent=1 // pred_check
      _
    $region11: #{tpu_custom_call.1} parent=1 // pred_check_branch
      %34 = sbr.rel (0) target = $region13
    $region12: #{tpu_custom_call.1} parent=1 // pred_region
      _
    $region13: #{tpu_custom_call.1} parent=1 // pred_fallthru
      _
    // Predicated region
    $region14: #{tpu_custom_call.1} parent=1 // pred_check
      _
    $region15: #{tpu_custom_call.1} parent=1 // pred_check_branch
      %36 = sbr.rel (0) target = $region17
    $region16: #{tpu_custom_call.1} parent=1 // pred_region
      %37 = dma.done [#allocation4], 128
    $region17: #{tpu_custom_call.1} parent=1 // pred_fallthru
      _
    // Predicated region
    $region18: #{tpu_custom_call.1} parent=1 // pred_check
      _
    $region19: #{tpu_custom_call.1} parent=1 // pred_check_branch
      %39 = sbr.rel (0) target = $region21
    $region20: #{tpu_custom_call.1} parent=1 // pred_region
      %40 = dma.done [#allocation7], 512
    $region21: #{tpu_custom_call.1} parent=1 // pred_fallthru
      _
    %p41 = scmp.eq.s32.totalorder 0, 0
    // Predicated region
    $region22: #{tpu_custom_call.1} parent=1 // pred_check
      %p42 = pneg %p41
    $region23: #{tpu_custom_call.1} parent=1 // pred_check_branch
      %44 = sbr.rel (%p42) target = $region25
    $region24: #{tpu_custom_call.1} parent=1 // pred_region
      %45 = vst [vmem:[#allocation2] sm:$0xff] 0.0
    $region25: #{tpu_custom_call.1} parent=1 // pred_fallthru
      _
    %v46 = vld [vmem:[#allocation2] sm:$0xff]
    %v47 = vld [vmem:[#allocation3] sm:$0xff]
    %v48 = vld [vmem:[#allocation6] sm:$0xff]
    %v49 = vld [vmem:[#allocation6 + $0x8] sm:$0xff]
    %v50 = vld [vmem:[#allocation6 + $0x10] sm:$0xff]
    %v51 = vld [vmem:[#allocation6 + $0x18] sm:$0xff]
    %vm52 = vcmask 261120
    %v54 = vsel %vm52, %v47, 0
    %56 = vmatprep.subr.mxu0 0.0
    %57 = vmatpush1.msra.mxu0 %v48
    %58 = vmatprep.subr.mxu0 0.0
    %59 = vmatpush1.msra.mxu0 %v49
    %60 = vmatprep.subr.mxu0 0.0
    %61 = vmatpush1.msra.mxu0 %v50
    %62 = vmatprep.subr.mxu0 0.0
    %63 = vmatpush1.msra.mxu0 %v51
    %64 = vmatprep.subr.mxu0 0.0
    %65 = vmatpush1.msra.mxu0 0.0
    %66 = vmatprep.subr.mxu0 0.0
    %67 = vmatpush1.msra.mxu0 0.0
    %68 = vmatprep.subr.mxu0 0.0
    %69 = vmatpush1.msra.mxu0 0.0
    %70 = vmatprep.subr.mxu0 0.0
    %71 = vmatpush1.msra.mxu0 0.0
    %72 = vmatprep.subr.mxu0 0.0
    %73 = vmatpush1.msra.mxu0 0.0
    %74 = vmatprep.subr.mxu0 0.0
    %75 = vmatpush1.msra.mxu0 0.0
    %76 = vmatprep.subr.mxu0 0.0
    %77 = vmatpush1.msra.mxu0 0.0
    %78 = vmatprep.subr.mxu0 0.0
    %79 = vmatpush1.msra.mxu0 0.0
    %80 = vmatprep.subr.mxu0 0.0
    %81 = vmatpush1.msra.mxu0 0.0
    %82 = vmatprep.subr.mxu0 0.0
    %83 = vmatpush1.msra.mxu0 0.0
    %84 = vmatprep.subr.mxu0 0.0
    %85 = vmatpush1.msra.mxu0 0.0
    %86 = vmatprep.subr.mxu0 0.0
    %87 = vmatpush1.msra.mxu0 0.0
    %88 = vmatprep.subr.mxu0 0.0
    %89 = vmatpush1.msra.mxu0 0.0
    %90 = vmatprep.subr.mxu0 0.0
    %91 = vmatpush1.msra.mxu0 0.0
    %92 = vmatprep.subr.mxu0 0.0
    %93 = vmatpush1.msra.mxu0 0.0
    %94 = vmatprep.subr.mxu0 0.0
    %95 = vmatpush1.msra.mxu0 0.0
    %96 = vmatprep.subr.mxu0 0.0
    %97 = vmatpush1.msra.mxu0 0.0
    %98 = vmatprep.subr.mxu0 0.0
    %99 = vmatpush1.msra.mxu0 0.0
    %100 = vmatprep.subr.mxu0 0.0
    %101 = vmatpush1.msra.mxu0 0.0
    %102 = vmatprep.subr.mxu0 0.0
    %103 = vmatpush1.msra.mxu0 0.0
    %104 = vmatprep.subr.mxu0 0.0
    %105 = vmatpush1.msra.mxu0 0.0
    %106 = vmatprep.subr.mxu0 0.0
    %107 = vmatpush1.msra.mxu0 0.0
    %108 = vmatprep.subr.mxu0 0.0
    %109 = vmatpush1.msra.mxu0 0.0
    %110 = vmatprep.subr.mxu0 0.0
    %111 = vmatpush1.msra.mxu0 0.0
    %112 = vmatprep.subr.mxu0 0.0
    %113 = vmatpush1.msra.mxu0 0.0
    %114 = vmatprep.subr.mxu0 0.0
    %115 = vmatpush1.msra.mxu0 0.0
    %116 = vmatprep.subr.mxu0 0.0
    %117 = vmatpush1.msra.mxu0 0.0
    %118 = vmatprep.subr.mxu0 0.0
    %119 = vmatpush1.msra.mxu0 0.0
    %120 = vmatprep.mubr.f32.mxu0 0.0
    %121 = vmatmul.mubr.f32.gmra.mrb[0].mxu0 %v54
    %v122 = vpop.f32.mrb[0].mxu0
    %v123 = vadd.f32 0.0, %v122
    %v124 = vpop.f32.mrb[0].mxu0
    %125 = vdwg.mxu0
    %v126 = vadd.f32 %v46, %v123
    %127 = vst [vmem:[#allocation2] sm:$0xff] %v126
    // Predicated region
    $region26: #{tpu_custom_call.1} parent=1 // pred_check
      %p128 = pneg %p41
    $region27: #{tpu_custom_call.1} parent=1 // pred_check_branch
      %130 = sbr.rel (%p128) target = $region29
    $region28: #{tpu_custom_call.1} parent=1 // pred_region
      %v131 = vld [vmem:[#allocation2] sm:$0xff]
      %v132 = vld [vmem:[%s2] sm:$0x1]
      %v134 = vlaneseq
      %v135 = vshrl.u32 %v134, 7
      %v136 = vsub.s32 0, %v135
      %v137 = vrot.slane %v132, %v136
      %v139 = vadd.f32 %v131, %v137
      %140 = vmax.xlane.f32.xlu0 %v139
      %v141 = vpop.xlane.xlu0 %140
      %v142 = vsub.f32 %v139, %v141
      %v143 = vmul.f32 %v142, 1.442695
      %v144 = vpow.pop %v143
      %145 = vadd.xlane.f32.xlu0 %v144
      %v146 = vpop.xlane.xlu0 %145
      %v147 = vrcp.pop %v146
      %v148 = vmul.f32 %v144, %v147
      %149 = vst [vmem:[#allocation8] sm:$0xff] %v148
    $region29: #{tpu_custom_call.1} parent=1 // pred_fallthru
      _
    // Predicated region
    $region30: #{tpu_custom_call.1} parent=1 // pred_check
      _
    $region31: #{tpu_custom_call.1} parent=1 // pred_check_branch
      %151 = sbr.rel (0) target = $region33
    $region32: #{tpu_custom_call.1} parent=1 // pred_region
      %s153 = ssub.s32 128, 128
      %154 = vsyncadd [#allocation5], %s153
      %s156 = sshll.u32 [#allocation8], 4
      %s157 = int_to_ptr.vmem [resolvable:$true] %s156
      %159 = dma.vmem_to_hbm [thread:$0]  %s157, 128, %s3, [#allocation5]
    $region33: #{tpu_custom_call.1} parent=1 // pred_fallthru
      _
    // Predicated region
    $region34: #{tpu_custom_call.1} parent=1 // pred_check
      _
    $region35: #{tpu_custom_call.1} parent=1 // pred_check_branch
      %161 = sbr.rel (0) target = $region37
    $region36: #{tpu_custom_call.1} parent=1 // pred_region
      %162 = dma.done [#allocation5], 128
    $region37: #{tpu_custom_call.1} parent=1 // pred_fallthru
      _
    %163 = vsyncpa [#allocation4], 1
    %164 = vsyncpa [#allocation7], 1
    %165 = vsyncpa [#allocation5], 1

</llo_original>
